<compile_context>
chip_gen: v5e
topology: v5e:2x2
jax: 0.10.0
libtpu: 0.0.40
codegen_flags: <defaults>
</compile_context>

<pallas_src>
import functools

import jax
import jax.numpy as jnp
from jax.experimental import pallas as pl
from jax.experimental.pallas import tpu as pltpu


def _lr_kernel(idx_ref, w_ref, bias_ref, out_ref):
    # idx_ref : (F, TB) int32, per-field offsets already applied, batch on lanes
    # w_ref   : (T, 1)  float32 flat embedding table (out_dim == 1), resident
    # bias_ref: (1, 1)  float32 in SMEM
    # out_ref : (1, TB) float32 = sigmoid(sum_f W[idx[f, :]] + bias), lane-dense
    idx = idx_ref[...]                                        # (F, TB)
    w = w_ref[...]                                            # (T, 1)
    bias = bias_ref[0, 0]                                     # scalar (SMEM)

    F, TB = idx.shape
    T = w.shape[0]

    # Multi-hot counts over the vocabulary: counts[t, b] = #{f : idx[f,b] == t}.
    # F compares (F is tiny and static -> unrolled), then ONE multiply by the
    # weight column and ONE sublane reduction.
    iota_t = jax.lax.broadcasted_iota(jnp.int32, (T, TB), 0)  # (T, TB)
    counts = jnp.zeros((T, TB), jnp.float32)
    for f in range(F):
        counts = counts + (iota_t == idx[f:f + 1, :]).astype(jnp.float32)

    logits = jnp.sum(counts * w, axis=0, keepdims=True) + bias  # (1, TB)
    out_ref[...] = jax.nn.sigmoid(logits)


@functools.partial(jax.jit, static_argnames=("tb",))
def lr_forward(idx_offset, weight, bias, *, tb=128):
    """idx_offset: (B, F) int32 with per-field offsets already added.
    weight: (T, 1) float32, bias: (1, 1) float32. Returns (B,) float32."""
    B, F = idx_offset.shape
    T = weight.shape[0]

    # Lane-dense layout: fields on sublanes, batch on lanes.
    idx_t = idx_offset.T                                      # (F, B)

    # Pad batch up to a multiple of the lane-tile (index 0 is always valid).
    n_tiles = pl.cdiv(B, tb)
    Bp = n_tiles * tb
    if Bp != B:
        idx_t = jnp.pad(idx_t, ((0, 0), (0, Bp - B)))

    out = pl.pallas_call(
        _lr_kernel,
        out_shape=jax.ShapeDtypeStruct((1, Bp), jnp.float32),
        grid=(n_tiles,),
        in_specs=[
            pl.BlockSpec((F, tb), lambda i: (0, i)),          # idx tile, pipelined
            pl.BlockSpec((T, 1), lambda i: (0, 0)),           # weight, resident
            pl.BlockSpec(memory_space=pltpu.MemorySpace.SMEM),  # bias scalar
        ],
        out_specs=pl.BlockSpec((1, tb), lambda i: (0, i)),    # lane-dense logits
        compiler_params=pltpu.CompilerParams(
            dimension_semantics=("parallel",)),
    )(idx_t, weight, bias)

    return out[0, :B]                                         # matches .squeeze(1)


def lr_reference(idx_offset, weight, bias):
    emb = weight[idx_offset, 0]                # (B, F)
    logit = emb.sum(axis=1) + bias[0, 0]       # (B,)
    return jax.nn.sigmoid(logit)


if __name__ == "__main__":
    key = jax.random.PRNGKey(0)

    # Synthetic "feature_dims" (vocabulary size per categorical field).
    feature_dims = (8, 16, 32, 8)
    total_dims = sum(feature_dims)             # flat embedding table size T
    offsets = jnp.asarray(
        [0] + list(jnp.cumsum(jnp.asarray(feature_dims))[:-1]), jnp.int32
    )                                          # (F,)

    batch = 256                                # 2 lane tiles of 128 -> grid=(2,)
    num_fields = len(feature_dims)

    # Deterministic parameters (nn.Embedding default ~ N(0,1); bias zeros).
    k_w, *k_idx = jax.random.split(key, 1 + num_fields)
    weight = jax.random.normal(k_w, (total_dims, 1), jnp.float32)
    bias = jnp.zeros((1, 1), jnp.float32)

    # Deterministic input indices, one column per field within its vocab.
    cols = [
        jax.random.randint(k_idx[f], (batch, 1), 0, feature_dims[f], jnp.int32)
        for f in range(num_fields)
    ]
    data = jnp.concatenate(cols, axis=1)                      # (B, F) raw ids
    idx_offset = data + offsets[None, :]                      # glue: add offsets

    out = lr_forward(idx_offset, weight, bias)
    out = jax.block_until_ready(out)

    ref = lr_reference(idx_offset, weight, bias)
    assert out.shape == (batch,)
    assert jnp.allclose(out, ref, atol=1e-5, rtol=1e-5)

    print("KERNEL_OK")
</pallas_src>

<mosaic_0001>
module attributes {stable_mosaic.version = 11 : i64} {
  func.func @_lr_kernel(%arg0: i32, %arg1: memref<4x128xi32, #tpu.memory_space<vmem>>, %arg2: memref<64x1xf32, #tpu.memory_space<vmem>>, %arg3: memref<1x1xf32, #tpu.memory_space<smem>>, %arg4: memref<1x128xf32, #tpu.memory_space<vmem>>) attributes {dimension_semantics = [#tpu.dimension_semantics<parallel>], iteration_bounds = array<i64: 2>, scalar_prefetch = 0 : i64, scratch_operands = 0 : i64, tpu.core_type = #tpu.core_type<tc>, window_params = [{transform_indices = @transform_0, window_bounds = array<i64: 4, 128>}, {pipeline_mode = #tpu.pipeline_mode<synchronous>, transform_indices = @transform_1, window_bounds = array<i64: 64, 1>}, {transform_indices = @transform_2, window_bounds = array<i64: 1, 1>}, {transform_indices = @transform_3, window_bounds = array<i64: 1, 128>}]} {
    %c0 = arith.constant 0 : index
    %c0_0 = arith.constant 0 : index
    %0 = vector.load %arg1[%c0, %c0_0] : memref<4x128xi32, #tpu.memory_space<vmem>>, vector<4x128xi32>
    %c0_1 = arith.constant 0 : index
    %c0_2 = arith.constant 0 : index
    %1 = vector.load %arg2[%c0_1, %c0_2] : memref<64x1xf32, #tpu.memory_space<vmem>>, vector<64x1xf32>
    %c0_3 = arith.constant 0 : index
    %c0_4 = arith.constant 0 : index
    %2 = memref.load %arg3[%c0_3, %c0_4] : memref<1x1xf32, #tpu.memory_space<smem>>
    %3 = tpu.iota {dimensions = array<i32: 0>} : vector<64x128xi32>
    %cst = arith.constant 0.000000e+00 : f32
    %4 = vector.broadcast %cst : f32 to vector<64x128xf32>
    %5 = vector.extract_strided_slice %0 {offsets = [0, 0], sizes = [1, 128], strides = [1, 1]} : vector<4x128xi32> to vector<1x128xi32>
    %6 = vector.broadcast %5 : vector<1x128xi32> to vector<64x128xi32>
    %7 = arith.cmpi eq, %3, %6 : vector<64x128xi32>
    %8 = arith.extui %7 : vector<64x128xi1> to vector<64x128xi32>
    %9 = arith.sitofp %8 : vector<64x128xi32> to vector<64x128xf32>
    %10 = arith.addf %4, %9 : vector<64x128xf32>
    %11 = vector.extract_strided_slice %0 {offsets = [1, 0], sizes = [1, 128], strides = [1, 1]} : vector<4x128xi32> to vector<1x128xi32>
    %12 = vector.broadcast %11 : vector<1x128xi32> to vector<64x128xi32>
    %13 = arith.cmpi eq, %3, %12 : vector<64x128xi32>
    %14 = arith.extui %13 : vector<64x128xi1> to vector<64x128xi32>
    %15 = arith.sitofp %14 : vector<64x128xi32> to vector<64x128xf32>
    %16 = arith.addf %10, %15 : vector<64x128xf32>
    %17 = vector.extract_strided_slice %0 {offsets = [2, 0], sizes = [1, 128], strides = [1, 1]} : vector<4x128xi32> to vector<1x128xi32>
    %18 = vector.broadcast %17 : vector<1x128xi32> to vector<64x128xi32>
    %19 = arith.cmpi eq, %3, %18 : vector<64x128xi32>
    %20 = arith.extui %19 : vector<64x128xi1> to vector<64x128xi32>
    %21 = arith.sitofp %20 : vector<64x128xi32> to vector<64x128xf32>
    %22 = arith.addf %16, %21 : vector<64x128xf32>
    %23 = vector.extract_strided_slice %0 {offsets = [3, 0], sizes = [1, 128], strides = [1, 1]} : vector<4x128xi32> to vector<1x128xi32>
    %24 = vector.broadcast %23 : vector<1x128xi32> to vector<64x128xi32>
    %25 = arith.cmpi eq, %3, %24 : vector<64x128xi32>
    %26 = arith.extui %25 : vector<64x128xi1> to vector<64x128xi32>
    %27 = arith.sitofp %26 : vector<64x128xi32> to vector<64x128xf32>
    %28 = arith.addf %22, %27 : vector<64x128xf32>
    %29 = vector.broadcast %1 : vector<64x1xf32> to vector<64x128xf32>
    %30 = arith.mulf %28, %29 : vector<64x128xf32>
    %cst_5 = arith.constant dense<0.000000e+00> : vector<128xf32>
    %31 = vector.multi_reduction <add>, %30, %cst_5 [0] : vector<64x128xf32> to vector<128xf32>
    %32 = vector.shape_cast %31 : vector<128xf32> to vector<1x128xf32>
    %33 = vector.broadcast %2 : f32 to vector<1x128xf32>
    %34 = arith.addf %32, %33 : vector<1x128xf32>
    %35 = arith.negf %34 : vector<1x128xf32>
    %36 = math.exp %35 : vector<1x128xf32>
    %cst_6 = arith.constant 1.000000e+00 : f32
    %37 = vector.broadcast %cst_6 : f32 to vector<1x128xf32>
    %38 = arith.addf %37, %36 : vector<1x128xf32>
    %39 = arith.divf %37, %38 : vector<1x128xf32>
    %c0_7 = arith.constant 0 : index
    %c0_8 = arith.constant 0 : index
    %40 = vector.load %arg4[%c0_7, %c0_8] : memref<1x128xf32, #tpu.memory_space<vmem>>, vector<1x128xf32>
    tpu.vector_store %arg4[%c0_7, %c0_8], %39 {strides = array<i32>} : memref<1x128xf32, #tpu.memory_space<vmem>>, vector<1x128xf32>,
    return
  }
  func.func @transform_0(%arg0: i32) -> (i32, i32) {
    %c0_i32 = arith.constant 0 : i32
    %c0_i32_0 = arith.constant 0 : i32
    return %c0_i32, %arg0 : i32, i32
  }
  func.func @transform_1(%arg0: i32) -> (i32, i32) {
    %c0_i32 = arith.constant 0 : i32
    %c0_i32_0 = arith.constant 0 : i32
    %c0_i32_1 = arith.constant 0 : i32
    return %c0_i32, %c0_i32_0 : i32, i32
  }
  func.func @transform_2(%arg0: i32) -> (i32, i32) {
    %c0_i32 = arith.constant 0 : i32
    %c0_i32_0 = arith.constant 0 : i32
    %c0_i32_1 = arith.constant 0 : i32
    return %c0_i32, %c0_i32_0 : i32, i32
  }
  func.func @transform_3(%arg0: i32) -> (i32, i32) {
    %c0_i32 = arith.constant 0 : i32
    %c0_i32_0 = arith.constant 0 : i32
    return %c0_i32, %arg0 : i32, i32
  }
}

</mosaic_0001>

<llo_original>
// kernel: lr_forward.1
$region0: #{lr_forward.1}
  #allocation0 [shape = 'u32[]', space=smem, size = 0x4, offset = 0x4, fixed_abs, tag = 'smem constant byte address 0x4 - core index']
  #allocation1 [shape = 'u32[72,128]{1,0:T(1,128)}', space=vmem, size = 0x9000, scoped, tag = 'internal scratch']
  #allocation2 [shape = 'f32[1,1]{1,0:T(1,128)S(6)}', space=smem, size = 0x200, scoped, tag = 'scoped memory for lr_forward.1']
  %s0 = inlined_call_operand.vmem [shape: s32[4,256], index: 0, kind: input, shape index: {}]
  %s1 = inlined_call_operand.vmem [shape: f32[64,1], index: 1, kind: input, shape index: {}]
  %s2 = inlined_call_operand.<no memory space> [shape: f32[1,1], index: 2, kind: input, shape index: {}]
  %s3 = inlined_call_operand.hbm [shape: f32[1,256], index: 3, kind: output, shape index: {}]
  %s4 = sld [smem:[#allocation0]]
  $region45: #{lr_forward.1} parent=0
    _
  %s6 = ssub.s32 1, %s4
  %s7 = scalar_select 0, %s6, %s4
  %8 = sst [smem:[#allocation2]] %s2
  $region1: #{lr_forward.1} parent=0
    #allocation3 [shape = 'u8[1024]{0}', space=vmem, size = 0x400, scoped, tag = 'output window, operand 0']
    #allocation4 [shape = 's32[2]{0}', space=sflag, size = 0x8, scoped, tag = 'scoped memory for lr_forward.1']
    %9 = vsyncpa [#allocation4], 0
    %s10 = scalar_lea.sflag [#allocation4], 1
    %11 = vsyncpa %s10, 0
    loop: start=0, step=1, limit=4
    $region2: #{lr_forward.1} parent=1 // loop_pre_header
      _
    $region3: #{lr_forward.1} parent=1 // loop_header
      %s13 = sphi 0, %s17
      %p14 = scmp.ge.s32.totalorder %s13, 4
      %s23 = sphi 0, %s25
      %s26 = sphi 0, %s23
      %s27 = sphi 0, %s26
      %s43 = sphi 0, %s27
      %s47 = sphi 0, %s47
      %s49 = sphi 0, %s47
      %s50 = sphi 0, %s49
      %s64 = sphi 0, %s50
      %s68 = sphi 0, %s68
      %s70 = sphi 0, %s68
      %s71 = sphi 0, %s70
      %s85 = sphi 0, %s71
      %s91 = sphi 0, %s93
      %s94 = sphi 0, %s91
      %s95 = sphi 0, %s94
      %s111 = sphi 0, %s95
    $region4: #{lr_forward.1} parent=1 // loop_header_branch
      %16 = sbr.rel (%p14) target = $region8
    $region5: #{lr_forward.1} parent=1 // loop_body
      %s18 = ssub.s32 %s13, 1
      %s19 = ssub.s32 %s13, 2
      %s20 = sadd.s32 %s13, 1
      %s21 = ssub.s32 %s13, %s20
      %p22 = scmp.eq.s32.totalorder %s21, 0
      %s24 = sadd.s32 %s23, 1
      %s25 = scalar_select %p22, %s23, %s24
      %p28 = pneg %p22
      %p29 = scmp.eq.s32.totalorder %s13, 1
      %p30 = por %p28, %p29
      %p31 = scmp.ne.s32.totalorder %s23, %s26
      %p32 = scmp.eq.s32.totalorder %s13, 0
      %p33 = por %p31, %p32
      %p34 = scmp.ne.s32.totalorder %s23, %s26
      %p35 = scmp.eq.s32.totalorder %s18, 1
      %p36 = por %p34, %p35
      %p37 = scmp.ne.s32.totalorder %s26, %s27
      %p38 = scmp.eq.s32.totalorder %s18, 0
      %p39 = por %p37, %p38
      %p40 = scmp.ne.s32.totalorder %s26, %s27
      %p41 = scmp.eq.s32.totalorder %s19, 1
      %p42 = por %p40, %p41
      %p44 = scmp.ne.s32.totalorder %s27, %s43
      %p45 = scmp.eq.s32.totalorder %s19, 0
      %p46 = por %p44, %p45
      %s48 = sadd.s32 %s47, 1
      %p51 = scmp.eq.s32.totalorder %s13, 1
      %p52 = scmp.ne.s32.totalorder %s47, %s49
      %p53 = scmp.eq.s32.totalorder %s13, 0
      %p54 = por %p52, %p53
      %p55 = scmp.ne.s32.totalorder %s47, %s49
      %p56 = scmp.eq.s32.totalorder %s18, 1
      %p57 = por %p55, %p56
      %p58 = scmp.ne.s32.totalorder %s49, %s50
      %p59 = scmp.eq.s32.totalorder %s18, 0
      %p60 = por %p58, %p59
      %p61 = scmp.ne.s32.totalorder %s49, %s50
      %p62 = scmp.eq.s32.totalorder %s19, 1
      %p63 = por %p61, %p62
      %p65 = scmp.ne.s32.totalorder %s50, %s64
      %p66 = scmp.eq.s32.totalorder %s19, 0
      %p67 = por %p65, %p66
      %s69 = sadd.s32 %s68, 1
      %p72 = scmp.eq.s32.totalorder %s13, 1
      %p73 = scmp.ne.s32.totalorder %s68, %s70
      %p74 = scmp.eq.s32.totalorder %s13, 0
      %p75 = por %p73, %p74
      %p76 = scmp.ne.s32.totalorder %s68, %s70
      %p77 = scmp.eq.s32.totalorder %s18, 1
      %p78 = por %p76, %p77
      %p79 = scmp.ne.s32.totalorder %s70, %s71
      %p80 = scmp.eq.s32.totalorder %s18, 0
      %p81 = por %p79, %p80
      %p82 = scmp.ne.s32.totalorder %s70, %s71
      %p83 = scmp.eq.s32.totalorder %s19, 1
      %p84 = por %p82, %p83
      %p86 = scmp.ne.s32.totalorder %s71, %s85
      %p87 = scmp.eq.s32.totalorder %s19, 0
      %p88 = por %p86, %p87
      %s89 = ssub.s32 %s13, %s20
      %p90 = scmp.eq.s32.totalorder %s89, 0
      %s92 = sadd.s32 %s91, 1
      %s93 = scalar_select %p90, %s91, %s92
      %p96 = pneg %p90
      %p97 = scmp.eq.s32.totalorder %s13, 1
      %p98 = por %p96, %p97
      %p99 = scmp.ne.s32.totalorder %s91, %s94
      %p100 = scmp.eq.s32.totalorder %s13, 0
      %p101 = por %p99, %p100
      %p102 = scmp.ne.s32.totalorder %s91, %s94
      %p103 = scmp.eq.s32.totalorder %s18, 1
      %p104 = por %p102, %p103
      %p105 = scmp.ne.s32.totalorder %s94, %s95
      %p106 = scmp.eq.s32.totalorder %s18, 0
      %p107 = por %p105, %p106
      %p108 = scmp.ne.s32.totalorder %s94, %s95
      %p109 = scmp.eq.s32.totalorder %s19, 1
      %p110 = por %p108, %p109
      %p112 = scmp.ne.s32.totalorder %s95, %s111
      %p113 = scmp.eq.s32.totalorder %s19, 0
      %p114 = por %p112, %p113
      %p115 = scmp.le.s32.totalorder 1, %s13
      %p116 = scmp.lt.s32.totalorder %s13, 3
      %p117 = pnand %p115, %p116
      %p118 = pneg %p117
      // Predicated region
      $region9: #{lr_forward.1} parent=5 // pred_check
        _
      $region10: #{lr_forward.1} parent=5 // pred_check_branch
        %120 = sbr.rel (%p117) target = $region12
      $region11: #{lr_forward.1} parent=5 // pred_region
        %s121 = ssub.s32 %s13, 1
        // Predicated region
        $region13: #{lr_forward.1} parent=11 // pred_check
          %p122 = pneg %p60
        $region14: #{lr_forward.1} parent=11 // pred_check_branch
          %124 = sbr.rel (%p122) target = $region16
        $region15: #{lr_forward.1} parent=11 // pred_region
          _
        $region16: #{lr_forward.1} parent=11 // pred_fallthru
          _
        // Predicated region
        $region17: #{lr_forward.1} parent=11 // pred_check
          %p125 = pneg %p81
        $region18: #{lr_forward.1} parent=11 // pred_check_branch
          %127 = sbr.rel (%p125) target = $region20
        $region19: #{lr_forward.1} parent=11 // pred_region
          _
        $region20: #{lr_forward.1} parent=11 // pred_fallthru
          _
      $region12: #{lr_forward.1} parent=5 // pred_fallthru
        _
      %p128 = scmp.lt.s32.totalorder %s13, 2
      // Predicated region
      $region21: #{lr_forward.1} parent=5 // pred_check
        %p129 = pneg %p128
      $region22: #{lr_forward.1} parent=5 // pred_check_branch
        %131 = sbr.rel (%p129) target = $region24
      $region23: #{lr_forward.1} parent=5 // pred_region
        // Predicated region
        $region25: #{lr_forward.1} parent=23 // pred_check
          %p132 = pneg %p33
        $region26: #{lr_forward.1} parent=23 // pred_check_branch
          %134 = sbr.rel (%p132) target = $region28
        $region27: #{lr_forward.1} parent=23 // pred_region
          %p135 = scmp.lt.s32.totalorder %s13, 1
          %s136 = scalar_select %p135, %s13, 1
          %s137 = smul.addr %s136, 4
          %s138 = scalar_lea.vmem %s0, %s137
        $region28: #{lr_forward.1} parent=23 // pred_fallthru
          _
      $region24: #{lr_forward.1} parent=5 // pred_fallthru
        _
      %p139 = scmp.le.s32.totalorder 1, %s13
      %p140 = scmp.lt.s32.totalorder %s13, 3
      %p141 = pnand %p139, %p140
      %p142 = pneg %p141
      // Predicated region
      $region29: #{lr_forward.1} parent=5 // pred_check
        _
      $region30: #{lr_forward.1} parent=5 // pred_check_branch
        %144 = sbr.rel (%p141) target = $region32
      $region31: #{lr_forward.1} parent=5 // pred_region
        %s145 = ssub.s32 %s13, 1
        %p146 = scmp.lt.s32.totalorder %s18, 1
        %s147 = scalar_select %p146, %s18, 1
        %s148 = smul.addr %s147, 4
        %s149 = scalar_lea.vmem %s0, %s148
        %p150 = pneg %p39
        %p151 = pneg %p36
        %p152 = pneg %p60
        %p153 = pneg %p57
        %p154 = pneg %p81
        %p155 = pneg %p78
        %p156 = pneg %p107
        %p157 = pneg %p104
        %s158 = sand.u32 %s94, 1
        %s159 = scalar_lea.sflag [#allocation4], %s158
        %s160 = sand.u32 %s94, 1
        %s161 = scalar_lea.vmem [#allocation3], %s160
        %p162 = scmp.lt.s32.totalorder %s18, 1
        %s163 = scalar_select %p162, %s18, 1
        %s164 = smul.addr %s163, 4
        %s165 = scalar_lea.vmem %s0, %s164
        %v166 = vld [vmem:[%s165] sm:$0xf]
        %v167 = vld [vmem:[%s1] sm:$0xff]
        %v168 = vld [vmem:[%s1 + $0x8] sm:$0xff]
        %v169 = vld [vmem:[%s1 + $0x10] sm:$0xff]
        %v170 = vld [vmem:[%s1 + $0x18] sm:$0xff]
        %v171 = vld [vmem:[%s1 + $0x20] sm:$0xff]
        %v172 = vld [vmem:[%s1 + $0x28] sm:$0xff]
        %v173 = vld [vmem:[%s1 + $0x30] sm:$0xff]
        %v174 = vld [vmem:[%s1 + $0x38] sm:$0xff]
        %s175 = sld [smem:[#allocation2]]
        %v176 = vlaneseq
        %v177 = vshrl.u32 %v176, 7
        %v178 = vadd.s32 %v177, 8
        %v179 = vadd.s32 %v177, 16
        %v180 = vadd.s32 %v177, 24
        %v181 = vadd.s32 %v177, 32
        %v182 = vadd.s32 %v177, 40
        %v183 = vadd.s32 %v177, 48
        %v184 = vadd.s32 %v177, 56
        %v185 = vperm.slane %v166, 0
        %vm186 = vcmp.eq.s32.totalorder %v177, %v185
        %vm187 = vcmp.eq.s32.totalorder %v178, %v185
        %vm188 = vcmp.eq.s32.totalorder %v179, %v185
        %vm189 = vcmp.eq.s32.totalorder %v180, %v185
        %vm190 = vcmp.eq.s32.totalorder %v181, %v185
        %vm191 = vcmp.eq.s32.totalorder %v182, %v185
        %vm192 = vcmp.eq.s32.totalorder %v183, %v185
        %vm193 = vcmp.eq.s32.totalorder %v184, %v185
        %v194 = vsel %vm186, 1, 0
        %v195 = vsel %vm187, 1, 0
        %v196 = vsel %vm188, 1, 0
        %v197 = vsel %vm189, 1, 0
        %v198 = vsel %vm190, 1, 0
        %v199 = vsel %vm191, 1, 0
        %v200 = vsel %vm192, 1, 0
        %v201 = vsel %vm193, 1, 0
        %v202 = vcvt.s32.f32 %v194
        %v203 = vcvt.s32.f32 %v195
        %v204 = vcvt.s32.f32 %v196
        %v205 = vcvt.s32.f32 %v197
        %v206 = vcvt.s32.f32 %v198
        %v207 = vcvt.s32.f32 %v199
        %v208 = vcvt.s32.f32 %v200
        %v209 = vcvt.s32.f32 %v201
        %v210 = vadd.f32 %v202, 0.0
        %v211 = vadd.f32 %v203, 0.0
        %v212 = vadd.f32 %v204, 0.0
        %v213 = vadd.f32 %v205, 0.0
        %v214 = vadd.f32 %v206, 0.0
        %v215 = vadd.f32 %v207, 0.0
        %v216 = vadd.f32 %v208, 0.0
        %v217 = vadd.f32 %v209, 0.0
        %v218 = vperm.slane %v166, 1
        %vm219 = vcmp.eq.s32.totalorder %v177, %v218
        %vm220 = vcmp.eq.s32.totalorder %v178, %v218
        %vm221 = vcmp.eq.s32.totalorder %v179, %v218
        %vm222 = vcmp.eq.s32.totalorder %v180, %v218
        %vm223 = vcmp.eq.s32.totalorder %v181, %v218
        %vm224 = vcmp.eq.s32.totalorder %v182, %v218
        %vm225 = vcmp.eq.s32.totalorder %v183, %v218
        %vm226 = vcmp.eq.s32.totalorder %v184, %v218
        %v227 = vsel %vm219, 1, 0
        %v228 = vsel %vm220, 1, 0
        %v229 = vsel %vm221, 1, 0
        %v230 = vsel %vm222, 1, 0
        %v231 = vsel %vm223, 1, 0
        %v232 = vsel %vm224, 1, 0
        %v233 = vsel %vm225, 1, 0
        %v234 = vsel %vm226, 1, 0
        %v235 = vcvt.s32.f32 %v227
        %v236 = vcvt.s32.f32 %v228
        %v237 = vcvt.s32.f32 %v229
        %v238 = vcvt.s32.f32 %v230
        %v239 = vcvt.s32.f32 %v231
        %v240 = vcvt.s32.f32 %v232
        %v241 = vcvt.s32.f32 %v233
        %v242 = vcvt.s32.f32 %v234
        %v243 = vadd.f32 %v210, %v235
        %v244 = vadd.f32 %v211, %v236
        %v245 = vadd.f32 %v212, %v237
        %v246 = vadd.f32 %v213, %v238
        %v247 = vadd.f32 %v214, %v239
        %v248 = vadd.f32 %v215, %v240
        %v249 = vadd.f32 %v216, %v241
        %v250 = vadd.f32 %v217, %v242
        %v251 = vperm.slane %v166, 2
        %vm252 = vcmp.eq.s32.totalorder %v177, %v251
        %vm253 = vcmp.eq.s32.totalorder %v178, %v251
        %vm254 = vcmp.eq.s32.totalorder %v179, %v251
        %vm255 = vcmp.eq.s32.totalorder %v180, %v251
        %vm256 = vcmp.eq.s32.totalorder %v181, %v251
        %vm257 = vcmp.eq.s32.totalorder %v182, %v251
        %vm258 = vcmp.eq.s32.totalorder %v183, %v251
        %vm259 = vcmp.eq.s32.totalorder %v184, %v251
        %v260 = vsel %vm252, 1, 0
        %v261 = vsel %vm253, 1, 0
        %v262 = vsel %vm254, 1, 0
        %v263 = vsel %vm255, 1, 0
        %v264 = vsel %vm256, 1, 0
        %v265 = vsel %vm257, 1, 0
        %v266 = vsel %vm258, 1, 0
        %v267 = vsel %vm259, 1, 0
        %v268 = vcvt.s32.f32 %v260
        %v269 = vcvt.s32.f32 %v261
        %v270 = vcvt.s32.f32 %v262
        %v271 = vcvt.s32.f32 %v263
        %v272 = vcvt.s32.f32 %v264
        %v273 = vcvt.s32.f32 %v265
        %v274 = vcvt.s32.f32 %v266
        %v275 = vcvt.s32.f32 %v267
        %v276 = vadd.f32 %v243, %v268
        %v277 = vadd.f32 %v244, %v269
        %v278 = vadd.f32 %v245, %v270
        %v279 = vadd.f32 %v246, %v271
        %v280 = vadd.f32 %v247, %v272
        %v281 = vadd.f32 %v248, %v273
        %v282 = vadd.f32 %v249, %v274
        %v283 = vadd.f32 %v250, %v275
        %v284 = vperm.slane %v166, 3
        %vm285 = vcmp.eq.s32.totalorder %v177, %v284
        %vm286 = vcmp.eq.s32.totalorder %v178, %v284
        %vm287 = vcmp.eq.s32.totalorder %v179, %v284
        %vm288 = vcmp.eq.s32.totalorder %v180, %v284
        %vm289 = vcmp.eq.s32.totalorder %v181, %v284
        %vm290 = vcmp.eq.s32.totalorder %v182, %v284
        %vm291 = vcmp.eq.s32.totalorder %v183, %v284
        %vm292 = vcmp.eq.s32.totalorder %v184, %v284
        %v293 = vsel %vm285, 1, 0
        %v294 = vsel %vm286, 1, 0
        %v295 = vsel %vm287, 1, 0
        %v296 = vsel %vm288, 1, 0
        %v297 = vsel %vm289, 1, 0
        %v298 = vsel %vm290, 1, 0
        %v299 = vsel %vm291, 1, 0
        %v300 = vsel %vm292, 1, 0
        %v301 = vcvt.s32.f32 %v293
        %v302 = vcvt.s32.f32 %v294
        %v303 = vcvt.s32.f32 %v295
        %v304 = vcvt.s32.f32 %v296
        %v305 = vcvt.s32.f32 %v297
        %v306 = vcvt.s32.f32 %v298
        %v307 = vcvt.s32.f32 %v299
        %v308 = vcvt.s32.f32 %v300
        %v309 = vadd.f32 %v276, %v301
        %v310 = vadd.f32 %v277, %v302
        %v311 = vadd.f32 %v278, %v303
        %v312 = vadd.f32 %v279, %v304
        %v313 = vadd.f32 %v280, %v305
        %v314 = vadd.f32 %v281, %v306
        %v315 = vadd.f32 %v282, %v307
        %v316 = vadd.f32 %v283, %v308
        %318 = vset.pattern.permute.xlu0 0
        %319 = vperm.xlu0 %318, %v167
        %v320 = vpop.permute.xlu0 %319
        %323 = vset.pattern.permute.xlu0 0
        %324 = vperm.xlu0 %323, %v168
        %v325 = vpop.permute.xlu0 %324
        %328 = vset.pattern.permute.xlu0 0
        %329 = vperm.xlu0 %328, %v169
        %v330 = vpop.permute.xlu0 %329
        %333 = vset.pattern.permute.xlu0 0
        %334 = vperm.xlu0 %333, %v170
        %v335 = vpop.permute.xlu0 %334
        %338 = vset.pattern.permute.xlu0 0
        %339 = vperm.xlu0 %338, %v171
        %v340 = vpop.permute.xlu0 %339
        %343 = vset.pattern.permute.xlu0 0
        %344 = vperm.xlu0 %343, %v172
        %v345 = vpop.permute.xlu0 %344
        %348 = vset.pattern.permute.xlu0 0
        %349 = vperm.xlu0 %348, %v173
        %v350 = vpop.permute.xlu0 %349
        %353 = vset.pattern.permute.xlu0 0
        %354 = vperm.xlu0 %353, %v174
        %v355 = vpop.permute.xlu0 %354
        %v357 = vmul.f32 %v309, %v320
        %v358 = vmul.f32 %v310, %v325
        %v359 = vmul.f32 %v311, %v330
        %v360 = vmul.f32 %v312, %v335
        %v361 = vmul.f32 %v313, %v340
        %v362 = vmul.f32 %v314, %v345
        %v363 = vmul.f32 %v315, %v350
        %v364 = vmul.f32 %v316, %v355
        %v365 = vadd.f32 %v357, %v358
        %v366 = vadd.f32 %v365, %v359
        %v367 = vadd.f32 %v366, %v360
        %v368 = vadd.f32 %v367, %v361
        %v369 = vadd.f32 %v368, %v362
        %v370 = vadd.f32 %v369, %v363
        %v371 = vadd.f32 %v370, %v364
        %v372 = vrot.slane %v371, 4
        %v373 = vadd.f32 %v371, %v372
        %v374 = vrot.slane %v373, 2
        %v375 = vadd.f32 %v373, %v374
        %v376 = vrot.slane %v375, 1
        %v377 = vadd.f32 %v375, %v376
        %v378 = vstv %s175
        %v379 = vadd.f32 %v377, %v378
        %v380 = vxor.u32 %v379, 2147483648
        %v381 = vmul.f32 %v380, 1.442695
        %v382 = vpow.pop %v381
        %v383 = vadd.f32 %v382, 1.0
        %v384 = vrcp.pop %v383
        %v385 = vmul.f32 %v383, %v384
        %v386 = vsub.f32 1.0, %v385
        %v387 = vmul.f32 %v384, %v386
        %v388 = vadd.f32 %v384, %v387
        %vm389 = vweird.f32 %v383
        %vm390 = vweird.f32 %v384
        %vm391 = vmor %vm389, %vm390
        %v392 = vsel %vm391, %v384, %v388
        %v393 = vand.u32 2147483647, %v383
        %vm394 = vcmp.eq.f32.partialorder %v393, 8.507059e+37
        %v395 = vand.u32 %v383, 2147483648
        %v396 = vor.u32 1.1754944e-38, %v395
        %v397 = vsel %vm394, %v396, %v392
        %v398 = vmul.f32 1.0, %v397
        %399 = vst [vmem:[%s161] sm:$0x1] %v398
        %s400 = sand.u32 %s94, 1
        %s401 = scalar_lea.sflag [#allocation4], %s400
        %s402 = sand.u32 %s94, 1
        %s403 = scalar_lea.vmem [#allocation3], %s402
        // Predicated region
        $region33: #{lr_forward.1} parent=31 // pred_check
          %p404 = pneg %p104
        $region34: #{lr_forward.1} parent=31 // pred_check_branch
          %406 = sbr.rel (%p404) target = $region36
        $region35: #{lr_forward.1} parent=31 // pred_region
          %408 = vsyncadd %s401, 0
          %s409 = scalar_lea.hbm %s3, %s18
          %s411 = sshll.u32 %s403, 4
          %s412 = int_to_ptr.vmem [resolvable:$true] %s411
          %s413 = sshll.u32 %s409, 4
          %s414 = int_to_ptr.hbm [resolvable:$true] %s413
          %416 = dma.vmem_to_hbm [thread:$0]  %s412, 16, %s414, %s401
        $region36: #{lr_forward.1} parent=31 // pred_fallthru
          _
      $region32: #{lr_forward.1} parent=5 // pred_fallthru
        _
      %p417 = scmp.le.s32.totalorder 2, %s13
      // Predicated region
      $region37: #{lr_forward.1} parent=5 // pred_check
        %p418 = pneg %p417
      $region38: #{lr_forward.1} parent=5 // pred_check_branch
        %420 = sbr.rel (%p418) target = $region40
      $region39: #{lr_forward.1} parent=5 // pred_region
        %s421 = ssub.s32 %s13, 2
        // Predicated region
        $region41: #{lr_forward.1} parent=39 // pred_check
          %p422 = pneg %p110
        $region42: #{lr_forward.1} parent=39 // pred_check_branch
          %424 = sbr.rel (%p422) target = $region44
        $region43: #{lr_forward.1} parent=39 // pred_region
          %s425 = sand.u32 %s95, 1
          %s426 = scalar_lea.sflag [#allocation4], %s425
          %s427 = sand.u32 %s95, 1
          %s428 = scalar_lea.vmem [#allocation3], %s427
          %430 = dma.done %s426, 16
        $region44: #{lr_forward.1} parent=39 // pred_fallthru
          _
      $region40: #{lr_forward.1} parent=5 // pred_fallthru
        _
    $region6: #{lr_forward.1} parent=1 // loop_footer
      %s17 = sadd.s32 1, %s13
    $region7: #{lr_forward.1} parent=1 // loop_footer_branch
      %12 = sbr.rel target = $region3
    $region8: #{lr_forward.1} parent=1 // loop_exit
      _
    %431 = vsyncpa [#allocation4], 1
    %s432 = scalar_lea.sflag [#allocation4], 1
    %433 = vsyncpa %s432, 1

</llo_original>
